<compile_context>
chip_gen: v5e
topology: v5e:2x2
jax: 0.10.0
libtpu: 0.0.40
codegen_flags: <defaults>
</compile_context>

<pallas_src>
import functools

import jax
import jax.numpy as jnp
from jax.experimental import pallas as pl
from jax.experimental.pallas import tpu as pltpu

_EPS = 1e-12  # torch.nn.functional.normalize default eps
_FAST_PATH_OK = None  # cache: does this runtime accept Buffered(1)/allow_input_fusion?


def _round_up(x: int, m: int) -> int:
    return ((x + m - 1) // m) * m


def _vmem_capacity_bytes() -> int:
    """Per-generation VMEM capacity (v5e/v6e: 128 MiB, v7x: 64 MiB per TensorCore)."""
    try:
        return int(pltpu.get_tpu_info().vmem_capacity_bytes)
    except Exception:
        return 64 * 1024 * 1024  # conservative default (v7x per-TC)


def _embedding_net_kernel(x_ref, w1_ref, b1_ref, w2_ref, b2_ref,
                          emb_ref, outz_ref, *, mxu_dtype):
    # fc1 + ReLU (MXU matmul, f32 accumulation).
    x = x_ref[...].astype(mxu_dtype)
    h = jnp.dot(x, w1_ref[...].astype(mxu_dtype), preferred_element_type=jnp.float32)
    emb = jnp.maximum(h + b1_ref[...], 0.0)
    emb_ref[...] = emb.astype(emb_ref.dtype)

    # fc2 + L2 normalize along the feature dim (dim=1).
    z = jnp.dot(emb.astype(mxu_dtype), w2_ref[...].astype(mxu_dtype),
                preferred_element_type=jnp.float32)
    z = z + b2_ref[...]
    sumsq = jnp.sum(z * z, axis=-1, keepdims=True)
    # z * rsqrt(max(sumsq, eps^2)) == z / max(||z||, eps) (F.normalize); rsqrt -> EUP slot.
    inv_norm = jax.lax.rsqrt(jnp.maximum(sumsq, _EPS * _EPS))
    outz_ref[...] = (z * inv_norm).astype(outz_ref.dtype)


def prepare_params(w1, b1, w2, b2, *, mxu_dtype=jnp.bfloat16):
    """One-time parameter prep (call at setup, reuse every forward):
      * pads the output-feature dims (embedSize, outzSize) to multiples of 128 so
        loads and, crucially, output stores are lane-dense (unmasked vst),
      * casts weight matrices to the MXU operand dtype (bf16 default: bf16-native
        MXU on v5e/v6e/v7x, ~3-4x faster than multi-pass f32; accumulation stays f32).
    Biases stay f32 (added post-accumulation)."""
    w1 = jnp.asarray(w1, jnp.float32)
    w2 = jnp.asarray(w2, jnp.float32)
    b1 = jnp.asarray(b1, jnp.float32).reshape(1, -1)
    b2 = jnp.asarray(b2, jnp.float32).reshape(1, -1)
    K, E = w1.shape
    E2, Z = w2.shape
    assert E2 == E and b1.shape[1] == E and b2.shape[1] == Z
    E_pad, Z_pad = _round_up(E, 128), _round_up(Z, 128)
    w1p = jnp.pad(w1, ((0, 0), (0, E_pad - E))).astype(mxu_dtype)
    w2p = jnp.pad(w2, ((0, E_pad - E), (0, Z_pad - Z))).astype(mxu_dtype)
    b1p = jnp.pad(b1, ((0, 0), (0, E_pad - E)))
    b2p = jnp.pad(b2, ((0, 0), (0, Z_pad - Z)))
    return {"w1": w1p, "b1": b1p, "w2": w2p, "b2": b2p,
            "K": K, "E": E, "Z": Z, "mxu_dtype": mxu_dtype}


def embedding_net_forward(features, params, *, block_m: int = 512,
                          emb_dtype=jnp.float32, trim: bool = True):
    """features: (B, resSize) f32; params from prepare_params().
    Returns (embedding (B, embedSize), out_z (B, outzSize))."""
    global _FAST_PATH_OK
    mxu_dtype = params["mxu_dtype"]
    w1p, b1p, w2p, b2p = params["w1"], params["b1"], params["w2"], params["b2"]
    K, E, Z = params["K"], params["E"], params["Z"]
    E_pad, Z_pad = w1p.shape[1], w2p.shape[1]

    x = jnp.asarray(features, jnp.float32)
    B, K_in = x.shape
    assert K_in == K

    # --- batch tile: generation/VMEM-aware, bf16-sublane aligned, kept to >=2
    # grid steps so the "parallel" batch axis can use both v7x TensorCores. ---
    is_bf16 = jnp.dtype(mxu_dtype) == jnp.dtype(jnp.bfloat16)
    row_align = 16 if is_bf16 else 8
    vmem_cap = _vmem_capacity_bytes()
    wbytes = (w1p.size * w1p.dtype.itemsize + w2p.size * w2p.dtype.itemsize
              + 4 * (b1p.size + b2p.size))
    # TODO(synk): if resident weights exceed the per-generation budget
    # (~20-24 MiB on v7x, ~48-56 MiB on v5e/v6e) add a K-reduction grid axis
    # ("arbitrary", f32 accumulator scratch) instead of keeping weights resident.
    per_row = 4 * 2 * (K + E_pad + Z_pad)           # double-buffered f32 tiles
    budget = int(0.6 * vmem_cap) - 2 * wbytes       # worst case: weights 2x buffered
    tm_cap = block_m
    if budget > 0:
        tm_cap = max(row_align, (budget // per_row) // row_align * row_align)
    TM = max(row_align, min(block_m, tm_cap))
    TM = min(TM, max(row_align, _round_up(pl.cdiv(B, 2), row_align)))
    B_pad = _round_up(B, TM)
    if B_pad != B:
        x = jnp.pad(x, ((0, B_pad - B), (0, 0)))    # only remaining per-call pad

    emb_itemsize = jnp.dtype(emb_dtype).itemsize
    est_bytes = (wbytes
                 + 2 * TM * (4 * K + emb_itemsize * E_pad + 4 * Z_pad)
                 + 4 * TM * (E_pad + Z_pad))        # in-kernel f32 temporaries
    vmem_limit = int(min(vmem_cap - (4 << 20), max(32 << 20, 2 * est_bytes)))

    cost = pl.CostEstimate(
        flops=2 * B_pad * (K * E_pad + E_pad * Z_pad),
        transcendentals=B_pad,
        bytes_accessed=(4 * B_pad * K + wbytes
                        + emb_itemsize * B_pad * E_pad + 4 * B_pad * Z_pad))

    kernel = functools.partial(_embedding_net_kernel, mxu_dtype=mxu_dtype)
    out_shape = (jax.ShapeDtypeStruct((B_pad, E_pad), emb_dtype),
                 jax.ShapeDtypeStruct((B_pad, Z_pad), jnp.float32))

    def _call(fast):
        # Grid-invariant weights/biases: single VMEM buffer (no double-buffering).
        wmode = dict(pipeline_mode=pl.Buffered(1)) if fast else {}
        cp = dict(dimension_semantics=("parallel",), vmem_limit_bytes=vmem_limit)
        if fast:
            cp["allow_input_fusion"] = [True] * 5   # fuse the batch pad into the input DMA
        return pl.pallas_call(
            kernel,
            out_shape=out_shape,
            grid=(B_pad // TM,),
            in_specs=[
                pl.BlockSpec((TM, K), lambda i: (i, 0)),              # x tile (pipelined)
                pl.BlockSpec((K, E_pad), lambda i: (0, 0), **wmode),  # w1 resident
                pl.BlockSpec((1, E_pad), lambda i: (0, 0), **wmode),  # b1 resident
                pl.BlockSpec((E_pad, Z_pad), lambda i: (0, 0), **wmode),  # w2 resident
                pl.BlockSpec((1, Z_pad), lambda i: (0, 0), **wmode),  # b2 resident
            ],
            out_specs=(
                pl.BlockSpec((TM, E_pad), lambda i: (i, 0)),
                pl.BlockSpec((TM, Z_pad), lambda i: (i, 0)),
            ),
            compiler_params=pltpu.CompilerParams(**cp),
            cost_estimate=cost,
        )(x, w1p, b1p, w2p, b2p)

    if _FAST_PATH_OK is None:
        try:
            emb_p, outz_p = _call(True)
            _FAST_PATH_OK = True
        except Exception:
            _FAST_PATH_OK = False
            emb_p, outz_p = _call(False)
    else:
        emb_p, outz_p = _call(_FAST_PATH_OK)

    if not trim:
        return emb_p, outz_p
    if (B_pad, E_pad) != (B, E):
        emb_p = emb_p[:B, :E]
    if (B_pad, Z_pad) != (B, Z):
        outz_p = outz_p[:B, :Z]
    return emb_p, outz_p


def reference_forward(features, w1, b1, w2, b2):
    emb = jnp.maximum(features @ w1 + b1.reshape(1, -1), 0.0)
    z = emb @ w2 + b2.reshape(1, -1)
    norm = jnp.sqrt(jnp.sum(z * z, axis=1, keepdims=True))
    return emb, z / jnp.maximum(norm, _EPS)


if __name__ == "__main__":
    key = jax.random.PRNGKey(0)

    def make_case(key, batch, resSize, embedSize, outzSize):
        k_x, k_w1, k_b1, k_w2, k_b2 = jax.random.split(key, 5)
        features = jax.random.normal(k_x, (batch, resSize), dtype=jnp.float32)
        w1 = jax.random.normal(k_w1, (resSize, embedSize), dtype=jnp.float32) * 0.05
        b1 = jax.random.normal(k_b1, (embedSize,), dtype=jnp.float32) * 0.01
        w2 = jax.random.normal(k_w2, (embedSize, outzSize), dtype=jnp.float32) * 0.05
        b2 = jax.random.normal(k_b2, (outzSize,), dtype=jnp.float32) * 0.01
        return features, w1, b1, w2, b2

    k0, k1 = jax.random.split(key)
    cases = [
        make_case(k0, batch=8, resSize=64, embedSize=32, outzSize=16),
        # exercises batch / feature padding paths (non-multiples of 8 / 128)
        make_case(k1, batch=10, resSize=200, embedSize=96, outzSize=50),
    ]

    for features, w1, b1, w2, b2 in cases:
        emb_ref, outz_ref = reference_forward(features, w1, b1, w2, b2)

        # Exact path (f32 MXU operands): matches the PyTorch/f32 reference to 1e-5.
        p_f32 = prepare_params(w1, b1, w2, b2, mxu_dtype=jnp.float32)
        emb, outz = embedding_net_forward(features, p_f32)
        jax.block_until_ready((emb, outz))
        assert emb.shape == emb_ref.shape and outz.shape == outz_ref.shape
        assert jnp.allclose(emb, emb_ref, atol=1e-5, rtol=1e-5)
        assert jnp.allclose(outz, outz_ref, atol=1e-5, rtol=1e-5)

        # Default fast path (bf16 MXU operands, f32 accumulation): loose tolerance.
        p_bf16 = prepare_params(w1, b1, w2, b2)       # mxu_dtype=bf16 default
        emb_b, outz_b = embedding_net_forward(features, p_bf16)
        jax.block_until_ready((emb_b, outz_b))
        assert emb_b.shape == emb_ref.shape and outz_b.shape == outz_ref.shape
        assert jnp.allclose(emb_b, emb_ref, atol=5e-2, rtol=5e-2)
        assert jnp.allclose(outz_b, outz_ref, atol=5e-2, rtol=5e-2)

    print("KERNEL_OK")
</pallas_src>

<mosaic_0001>
module attributes {stable_mosaic.version = 11 : i64} {
  func.func @_embedding_net_kernel(%arg0: i32, %arg1: memref<8x64xf32, #tpu.memory_space<vmem>>, %arg2: memref<64x128xf32, #tpu.memory_space<vmem>>, %arg3: memref<1x128xf32, #tpu.memory_space<vmem>>, %arg4: memref<128x128xf32, #tpu.memory_space<vmem>>, %arg5: memref<1x128xf32, #tpu.memory_space<vmem>>, %arg6: memref<8x128xf32, #tpu.memory_space<vmem>>, %arg7: memref<8x128xf32, #tpu.memory_space<vmem>>) attributes {dimension_semantics = [#tpu.dimension_semantics<parallel>], iteration_bounds = array<i64: 1>, scalar_prefetch = 0 : i64, scratch_operands = 0 : i64, tpu.core_type = #tpu.core_type<tc>, window_params = [{transform_indices = @transform_0, window_bounds = array<i64: 8, 64>}, {pipeline_mode = #tpu.pipeline_mode<synchronous>, transform_indices = @transform_1, window_bounds = array<i64: 64, 128>}, {pipeline_mode = #tpu.pipeline_mode<synchronous>, transform_indices = @transform_2, window_bounds = array<i64: 1, 128>}, {pipeline_mode = #tpu.pipeline_mode<synchronous>, transform_indices = @transform_3, window_bounds = array<i64: 128, 128>}, {pipeline_mode = #tpu.pipeline_mode<synchronous>, transform_indices = @transform_4, window_bounds = array<i64: 1, 128>}, {transform_indices = @transform_5, window_bounds = array<i64: 8, 128>}, {transform_indices = @transform_6, window_bounds = array<i64: 8, 128>}]} {
    %c0 = arith.constant 0 : index
    %c0_0 = arith.constant 0 : index
    %0 = vector.load %arg1[%c0, %c0_0] : memref<8x64xf32, #tpu.memory_space<vmem>>, vector<8x64xf32>
    %c0_1 = arith.constant 0 : index
    %c0_2 = arith.constant 0 : index
    %1 = vector.load %arg2[%c0_1, %c0_2] : memref<64x128xf32, #tpu.memory_space<vmem>>, vector<64x128xf32>
    %cst = arith.constant dense<0.000000e+00> : vector<8x128xf32>
    %2 = tpu.matmul %0, %1, %cst {dimension_numbers = #tpu.dot_dimension_numbers<[1], [0], [0], [1], [0, 0, 1, 1], [], []>} : vector<8x64xf32>, vector<64x128xf32>, vector<8x128xf32> -> vector<8x128xf32>
    %c0_3 = arith.constant 0 : index
    %c0_4 = arith.constant 0 : index
    %3 = vector.load %arg3[%c0_3, %c0_4] : memref<1x128xf32, #tpu.memory_space<vmem>>, vector<1x128xf32>
    %4 = vector.broadcast %3 : vector<1x128xf32> to vector<8x128xf32>
    %5 = arith.addf %2, %4 : vector<8x128xf32>
    %cst_5 = arith.constant 0.000000e+00 : f32
    %6 = vector.broadcast %cst_5 : f32 to vector<8x128xf32>
    %7 = arith.maximumf %5, %6 : vector<8x128xf32>
    %c0_6 = arith.constant 0 : index
    %c0_7 = arith.constant 0 : index
    %8 = vector.load %arg6[%c0_6, %c0_7] : memref<8x128xf32, #tpu.memory_space<vmem>>, vector<8x128xf32>
    tpu.vector_store %arg6[%c0_6, %c0_7], %7 {strides = array<i32>} : memref<8x128xf32, #tpu.memory_space<vmem>>, vector<8x128xf32>,
    %c0_8 = arith.constant 0 : index
    %c0_9 = arith.constant 0 : index
    %9 = vector.load %arg4[%c0_8, %c0_9] : memref<128x128xf32, #tpu.memory_space<vmem>>, vector<128x128xf32>
    %cst_10 = arith.constant dense<0.000000e+00> : vector<8x128xf32>
    %10 = tpu.matmul %7, %9, %cst_10 {dimension_numbers = #tpu.dot_dimension_numbers<[1], [0], [0], [1], [0, 0, 1, 1], [], []>} : vector<8x128xf32>, vector<128x128xf32>, vector<8x128xf32> -> vector<8x128xf32>
    %c0_11 = arith.constant 0 : index
    %c0_12 = arith.constant 0 : index
    %11 = vector.load %arg5[%c0_11, %c0_12] : memref<1x128xf32, #tpu.memory_space<vmem>>, vector<1x128xf32>
    %12 = vector.broadcast %11 : vector<1x128xf32> to vector<8x128xf32>
    %13 = arith.addf %10, %12 : vector<8x128xf32>
    %14 = arith.mulf %13, %13 : vector<8x128xf32>
    %cst_13 = arith.constant dense<0.000000e+00> : vector<8xf32>
    %15 = vector.multi_reduction <add>, %14, %cst_13 [1] : vector<8x128xf32> to vector<8xf32>
    %16 = vector.shape_cast %15 : vector<8xf32> to vector<8x1xf32>
    %cst_14 = arith.constant 1.000000e-24 : f32
    %17 = vector.broadcast %cst_14 : f32 to vector<8x1xf32>
    %18 = arith.maximumf %16, %17 : vector<8x1xf32>
    %19 = math.rsqrt %18 : vector<8x1xf32>
    %20 = vector.broadcast %19 : vector<8x1xf32> to vector<8x128xf32>
    %21 = arith.mulf %13, %20 : vector<8x128xf32>
    %c0_15 = arith.constant 0 : index
    %c0_16 = arith.constant 0 : index
    %22 = vector.load %arg7[%c0_15, %c0_16] : memref<8x128xf32, #tpu.memory_space<vmem>>, vector<8x128xf32>
    tpu.vector_store %arg7[%c0_15, %c0_16], %21 {strides = array<i32>} : memref<8x128xf32, #tpu.memory_space<vmem>>, vector<8x128xf32>,
    return
  }
  func.func @transform_0(%arg0: i32) -> (i32, i32) {
    %c0_i32 = arith.constant 0 : i32
    %c0_i32_0 = arith.constant 0 : i32
    return %arg0, %c0_i32 : i32, i32
  }
  func.func @transform_1(%arg0: i32) -> (i32, i32) {
    %c0_i32 = arith.constant 0 : i32
    %c0_i32_0 = arith.constant 0 : i32
    %c0_i32_1 = arith.constant 0 : i32
    return %c0_i32, %c0_i32_0 : i32, i32
  }
  func.func @transform_2(%arg0: i32) -> (i32, i32) {
    %c0_i32 = arith.constant 0 : i32
    %c0_i32_0 = arith.constant 0 : i32
    %c0_i32_1 = arith.constant 0 : i32
    return %c0_i32, %c0_i32_0 : i32, i32
  }
  func.func @transform_3(%arg0: i32) -> (i32, i32) {
    %c0_i32 = arith.constant 0 : i32
    %c0_i32_0 = arith.constant 0 : i32
    %c0_i32_1 = arith.constant 0 : i32
    return %c0_i32, %c0_i32_0 : i32, i32
  }
  func.func @transform_4(%arg0: i32) -> (i32, i32) {
    %c0_i32 = arith.constant 0 : i32
    %c0_i32_0 = arith.constant 0 : i32
    %c0_i32_1 = arith.constant 0 : i32
    return %c0_i32, %c0_i32_0 : i32, i32
  }
  func.func @transform_5(%arg0: i32) -> (i32, i32) {
    %c0_i32 = arith.constant 0 : i32
    %c0_i32_0 = arith.constant 0 : i32
    return %arg0, %c0_i32 : i32, i32
  }
  func.func @transform_6(%arg0: i32) -> (i32, i32) {
    %c0_i32 = arith.constant 0 : i32
    %c0_i32_0 = arith.constant 0 : i32
    return %arg0, %c0_i32 : i32, i32
  }
}

module attributes {stable_mosaic.version = 11 : i64} {
  func.func @_embedding_net_kernel(%arg0: i32, %arg1: memref<8x64xf32, #tpu.memory_space<vmem>>, %arg2: memref<64x128xf32, #tpu.memory_space<vmem>>, %arg3: memref<1x128xf32, #tpu.memory_space<vmem>>, %arg4: memref<128x128xf32, #tpu.memory_space<vmem>>, %arg5: memref<1x128xf32, #tpu.memory_space<vmem>>, %arg6: memref<8x128xf32, #tpu.memory_space<vmem>>, %arg7: memref<8x128xf32, #tpu.memory_space<vmem>>) attributes {dimension_semantics = [#tpu.dimension_semantics<parallel>], iteration_bounds = array<i64: 1>, scalar_prefetch = 0 : i64, scratch_operands = 0 : i64, tpu.core_type = #tpu.core_type<tc>, window_params = [{transform_indices = @transform_0, window_bounds = array<i64: 8, 64>}, {pipeline_mode = #tpu.pipeline_mode<synchronous>, transform_indices = @transform_1, window_bounds = array<i64: 64, 128>}, {pipeline_mode = #tpu.pipeline_mode<synchronous>, transform_indices = @transform_2, window_bounds = array<i64: 1, 128>}, {pipeline_mode = #tpu.pipeline_mode<synchronous>, transform_indices = @transform_3, window_bounds = array<i64: 128, 128>}, {pipeline_mode = #tpu.pipeline_mode<synchronous>, transform_indices = @transform_4, window_bounds = array<i64: 1, 128>}, {transform_indices = @transform_5, window_bounds = array<i64: 8, 128>}, {transform_indices = @transform_6, window_bounds = array<i64: 8, 128>}]} {
    %c0 = arith.constant 0 : index
    %c0_0 = arith.constant 0 : index
    %0 = vector.load %arg1[%c0, %c0_0] : memref<8x64xf32, #tpu.memory_space<vmem>>, vector<8x64xf32>
    %c0_1 = arith.constant 0 : index
    %c0_2 = arith.constant 0 : index
    %1 = vector.load %arg2[%c0_1, %c0_2] : memref<64x128xf32, #tpu.memory_space<vmem>>, vector<64x128xf32>
    %cst = arith.constant dense<0.000000e+00> : vector<8x128xf32>
    %2 = tpu.matmul %0, %1, %cst {dimension_numbers = #tpu.dot_dimension_numbers<[1], [0], [0], [1], [0, 0, 1, 1], [], []>} : vector<8x64xf32>, vector<64x128xf32>, vector<8x128xf32> -> vector<8x128xf32>
    %c0_3 = arith.constant 0 : index
    %c0_4 = arith.constant 0 : index
    %3 = vector.load %arg3[%c0_3, %c0_4] : memref<1x128xf32, #tpu.memory_space<vmem>>, vector<1x128xf32>
    %4 = vector.broadcast %3 : vector<1x128xf32> to vector<8x128xf32>
    %5 = arith.addf %2, %4 : vector<8x128xf32>
    %cst_5 = arith.constant 0.000000e+00 : f32
    %6 = vector.broadcast %cst_5 : f32 to vector<8x128xf32>
    %7 = arith.maximumf %5, %6 : vector<8x128xf32>
    %c0_6 = arith.constant 0 : index
    %c0_7 = arith.constant 0 : index
    %8 = vector.load %arg6[%c0_6, %c0_7] : memref<8x128xf32, #tpu.memory_space<vmem>>, vector<8x128xf32>
    tpu.vector_store %arg6[%c0_6, %c0_7], %7 {strides = array<i32>} : memref<8x128xf32, #tpu.memory_space<vmem>>, vector<8x128xf32>,
    %c0_8 = arith.constant 0 : index
    %c0_9 = arith.constant 0 : index
    %9 = vector.load %arg4[%c0_8, %c0_9] : memref<128x128xf32, #tpu.memory_space<vmem>>, vector<128x128xf32>
    %cst_10 = arith.constant dense<0.000000e+00> : vector<8x128xf32>
    %10 = tpu.matmul %7, %9, %cst_10 {dimension_numbers = #tpu.dot_dimension_numbers<[1], [0], [0], [1], [0, 0, 1, 1], [], []>} : vector<8x128xf32>, vector<128x128xf32>, vector<8x128xf32> -> vector<8x128xf32>
    %c0_11 = arith.constant 0 : index
    %c0_12 = arith.constant 0 : index
    %11 = vector.load %arg5[%c0_11, %c0_12] : memref<1x128xf32, #tpu.memory_space<vmem>>, vector<1x128xf32>
    %12 = vector.broadcast %11 : vector<1x128xf32> to vector<8x128xf32>
    %13 = arith.addf %10, %12 : vector<8x128xf32>
    %14 = arith.mulf %13, %13 : vector<8x128xf32>
    %cst_13 = arith.constant dense<0.000000e+00> : vector<8xf32>
    %15 = vector.multi_reduction <add>, %14, %cst_13 [1] : vector<8x128xf32> to vector<8xf32>
    %16 = vector.shape_cast %15 : vector<8xf32> to vector<8x1xf32>
    %cst_14 = arith.constant 1.000000e-24 : f32
    %17 = vector.broadcast %cst_14 : f32 to vector<8x1xf32>
    %18 = arith.maximumf %16, %17 : vector<8x1xf32>
    %19 = math.rsqrt %18 : vector<8x1xf32>
    %20 = vector.broadcast %19 : vector<8x1xf32> to vector<8x128xf32>
    %21 = arith.mulf %13, %20 : vector<8x128xf32>
    %c0_15 = arith.constant 0 : index
    %c0_16 = arith.constant 0 : index
    %22 = vector.load %arg7[%c0_15, %c0_16] : memref<8x128xf32, #tpu.memory_space<vmem>>, vector<8x128xf32>
    tpu.vector_store %arg7[%c0_15, %c0_16], %21 {strides = array<i32>} : memref<8x128xf32, #tpu.memory_space<vmem>>, vector<8x128xf32>,
    return
  }
  func.func @transform_0(%arg0: i32) -> (i32, i32) {
    %c0_i32 = arith.constant 0 : i32
    %c0_i32_0 = arith.constant 0 : i32
    return %arg0, %c0_i32 : i32, i32
  }
  func.func @transform_1(%arg0: i32) -> (i32, i32) {
    %c0_i32 = arith.constant 0 : i32
    %c0_i32_0 = arith.constant 0 : i32
    %c0_i32_1 = arith.constant 0 : i32
    return %c0_i32, %c0_i32_0 : i32, i32
  }
  func.func @transform_2(%arg0: i32) -> (i32, i32) {
    %c0_i32 = arith.constant 0 : i32
    %c0_i32_0 = arith.constant 0 : i32
    %c0_i32_1 = arith.constant 0 : i32
    return %c0_i32, %c0_i32_0 : i32, i32
  }
  func.func @transform_3(%arg0: i32) -> (i32, i32) {
    %c0_i32 = arith.constant 0 : i32
    %c0_i32_0 = arith.constant 0 : i32
    %c0_i32_1 = arith.constant 0 : i32
    return %c0_i32, %c0_i32_0 : i32, i32
  }
  func.func @transform_4(%arg0: i32) -> (i32, i32) {
    %c0_i32 = arith.constant 0 : i32
    %c0_i32_0 = arith.constant 0 : i32
    %c0_i32_1 = arith.constant 0 : i32
    return %c0_i32, %c0_i32_0 : i32, i32
  }
  func.func @transform_5(%arg0: i32) -> (i32, i32) {
    %c0_i32 = arith.constant 0 : i32
    %c0_i32_0 = arith.constant 0 : i32
    return %arg0, %c0_i32 : i32, i32
  }
  func.func @transform_6(%arg0: i32) -> (i32, i32) {
    %c0_i32 = arith.constant 0 : i32
    %c0_i32_0 = arith.constant 0 : i32
    return %arg0, %c0_i32 : i32, i32
  }
}

</mosaic_0001>

<llo_original>
// kernel: tpu_custom_call.1
$region0: #{tpu_custom_call.1}
  #allocation0 [shape = 'u32[]', space=smem, size = 0x4, offset = 0x4, fixed_abs, tag = 'smem constant byte address 0x4 - core index']
  #allocation1 [shape = 'u32[72,128]{1,0:T(1,128)}', space=vmem, size = 0x9000, scoped, tag = 'internal scratch']
  %s0 = inlined_call_operand.hbm [shape: f32[8,64], index: 0, kind: input, shape index: {}]
  %s1 = inlined_call_operand.hbm [shape: f32[64,128], index: 1, kind: input, shape index: {}]
  %s2 = inlined_call_operand.vmem [shape: f32[1,128], index: 2, kind: input, shape index: {}]
  %s3 = inlined_call_operand.hbm [shape: f32[128,128], index: 3, kind: input, shape index: {}]
  %s4 = inlined_call_operand.vmem [shape: f32[1,128], index: 4, kind: input, shape index: {}]
  %s5 = inlined_call_operand.hbm [shape: f32[8,128], index: 5, kind: output, shape index: {0}]
  %s6 = inlined_call_operand.hbm [shape: f32[8,128], index: 6, kind: output, shape index: {1}]
  %7 = xla_tuple %s5, %s6
  %s8 = sld [smem:[#allocation0]]
  $region50: #{tpu_custom_call.1} parent=0
    _
  %s10 = ssub.s32 1, %s8
  %s11 = scalar_select 0, %s10, %s8
  $region1: #{tpu_custom_call.1} parent=0
    #allocation2 [shape = 'u8[4096]{0}', space=vmem, size = 0x1000, scoped, tag = 'input window, operand 0, single buffered']
    #allocation3 [shape = 's32[1]{0}', space=sflag, size = 0x4, scoped, tag = 'scoped memory for tpu_custom_call.1']
    #allocation4 [shape = 's32[1]{0}', space=sflag, size = 0x4, scoped, tag = 'scoped memory for tpu_custom_call.1']
    #allocation5 [shape = 'u8[32768]{0}', space=vmem, size = 0x8000, scoped, tag = 'input window, operand 1, single buffered']
    #allocation6 [shape = 's32[1]{0}', space=sflag, size = 0x4, scoped, tag = 'scoped memory for tpu_custom_call.1']
    #allocation7 [shape = 'u8[65536]{0}', space=vmem, size = 0x10000, scoped, tag = 'input window, operand 3, single buffered']
    #allocation8 [shape = 'u8[4096]{0}', space=vmem, size = 0x1000, scoped, tag = 'output window, operand 0, single buffered']
    #allocation9 [shape = 'u8[4096]{0}', space=vmem, size = 0x1000, scoped, tag = 'output window, operand 1, single buffered']
    #allocation10 [shape = 's32[1]{0}', space=sflag, size = 0x4, scoped, tag = 'scoped memory for tpu_custom_call.1']
    %12 = vsyncpa [#allocation3], 0
    %13 = vsyncpa [#allocation6], 0
    %14 = vsyncpa [#allocation4], 0
    %15 = vsyncpa [#allocation10], 0
    // Predicated region
    $region2: #{tpu_custom_call.1} parent=1 // pred_check
      _
    $region3: #{tpu_custom_call.1} parent=1 // pred_check_branch
      %17 = sbr.rel (0) target = $region5
    $region4: #{tpu_custom_call.1} parent=1 // pred_region
      %19 = vsyncadd [#allocation3], 0
      %s21 = sshll.u32 %s0, 4
      %s22 = int_to_ptr.hbm [resolvable:$true] %s21
      %s23 = sshll.u32 [#allocation2], 4
      %s24 = int_to_ptr.vmem [resolvable:$true] %s23
      %26 = dma.hbm_to_vmem [thread:$0]  %s22, 128, %s24, [#allocation3]
    $region5: #{tpu_custom_call.1} parent=1 // pred_fallthru
      _
    // Predicated region
    $region6: #{tpu_custom_call.1} parent=1 // pred_check
      _
    $region7: #{tpu_custom_call.1} parent=1 // pred_check_branch
      %28 = sbr.rel (0) target = $region9
    $region8: #{tpu_custom_call.1} parent=1 // pred_region
      %30 = vsyncadd [#allocation6], 0
      %s31 = sshll.u32 %s1, 4
      %s32 = int_to_ptr.hbm [resolvable:$true] %s31
      %s33 = sshll.u32 [#allocation5], 4
      %s34 = int_to_ptr.vmem [resolvable:$true] %s33
      %39 = dma.hbm_to_vmem [thread:$0]  %s32, 1024, %s34, [#allocation6], 128, 128, 8
    $region9: #{tpu_custom_call.1} parent=1 // pred_fallthru
      _
    // Predicated region
    $region10: #{tpu_custom_call.1} parent=1 // pred_check
      _
    $region11: #{tpu_custom_call.1} parent=1 // pred_check_branch
      %41 = sbr.rel (0) target = $region13
    $region12: #{tpu_custom_call.1} parent=1 // pred_region
      _
    $region13: #{tpu_custom_call.1} parent=1 // pred_fallthru
      _
    // Predicated region
    $region14: #{tpu_custom_call.1} parent=1 // pred_check
      _
    $region15: #{tpu_custom_call.1} parent=1 // pred_check_branch
      %43 = sbr.rel (0) target = $region17
    $region16: #{tpu_custom_call.1} parent=1 // pred_region
      %45 = vsyncadd [#allocation6], 0
      %s46 = sshll.u32 %s3, 4
      %s47 = int_to_ptr.hbm [resolvable:$true] %s46
      %s48 = sshll.u32 [#allocation7], 4
      %s49 = int_to_ptr.vmem [resolvable:$true] %s48
      %54 = dma.hbm_to_vmem [thread:$0]  %s47, 2048, %s49, [#allocation6], 128, 128, 8
    $region17: #{tpu_custom_call.1} parent=1 // pred_fallthru
      _
    // Predicated region
    $region18: #{tpu_custom_call.1} parent=1 // pred_check
      _
    $region19: #{tpu_custom_call.1} parent=1 // pred_check_branch
      %56 = sbr.rel (0) target = $region21
    $region20: #{tpu_custom_call.1} parent=1 // pred_region
      _
    $region21: #{tpu_custom_call.1} parent=1 // pred_fallthru
      _
    // Predicated region
    $region22: #{tpu_custom_call.1} parent=1 // pred_check
      _
    $region23: #{tpu_custom_call.1} parent=1 // pred_check_branch
      %58 = sbr.rel (0) target = $region25
    $region24: #{tpu_custom_call.1} parent=1 // pred_region
      %60 = dma.done [#allocation3], 128
    $region25: #{tpu_custom_call.1} parent=1 // pred_fallthru
      _
    // Predicated region
    $region26: #{tpu_custom_call.1} parent=1 // pred_check
      _
    $region27: #{tpu_custom_call.1} parent=1 // pred_check_branch
      %62 = sbr.rel (0) target = $region29
    $region28: #{tpu_custom_call.1} parent=1 // pred_region
      %64 = dma.done [#allocation6], 1024
    $region29: #{tpu_custom_call.1} parent=1 // pred_fallthru
      _
    // Predicated region
    $region30: #{tpu_custom_call.1} parent=1 // pred_check
      _
    $region31: #{tpu_custom_call.1} parent=1 // pred_check_branch
      %66 = sbr.rel (0) target = $region33
    $region32: #{tpu_custom_call.1} parent=1 // pred_region
      %68 = dma.done [#allocation6], 2048
    $region33: #{tpu_custom_call.1} parent=1 // pred_fallthru
      _
    %v69 = vld [vmem:[#allocation2] sm:$0xff]
    %v70 = vld [vmem:[#allocation5] sm:$0xff]
    %v71 = vld [vmem:[#allocation5 + $0x8] sm:$0xff]
    %v72 = vld [vmem:[#allocation5 + $0x10] sm:$0xff]
    %v73 = vld [vmem:[#allocation5 + $0x18] sm:$0xff]
    %v74 = vld [vmem:[#allocation5 + $0x20] sm:$0xff]
    %v75 = vld [vmem:[#allocation5 + $0x28] sm:$0xff]
    %v76 = vld [vmem:[#allocation5 + $0x30] sm:$0xff]
    %v77 = vld [vmem:[#allocation5 + $0x38] sm:$0xff]
    %v78 = vld [vmem:[%s2] sm:$0x1]
    %v80 = vperm.slane %v78, 0
    %vm82 = vcmask 523264
    %v84 = vsel %vm82, %v69, 0
    %86 = vmatpush.msra.mxu0 0.0
    %87 = vmatpush.msra.mxu0 0.0
    %88 = vmatpush.msra.mxu0 0.0
    %89 = vmatpush.msra.mxu0 0.0
    %90 = vmatpush.msra.mxu0 0.0
    %91 = vmatpush.msra.mxu0 0.0
    %92 = vmatpush.msra.mxu0 0.0
    %93 = vmatpush.msra.mxu0 0.0
    %94 = vmatpush.msra.mxu0 %v77
    %95 = vmatpush.msra.mxu0 %v76
    %96 = vmatpush.msra.mxu0 %v75
    %97 = vmatpush.msra.mxu0 %v74
    %98 = vmatpush.msra.mxu0 %v73
    %99 = vmatpush.msra.mxu0 %v72
    %100 = vmatpush.msra.mxu0 %v71
    %101 = vmatpush.msra.mxu0 %v70
    %102 = vmatmul.f32.gmra.mxu0 %v84
    %v103 = vpop.f32.mrf.mxu0
    %v104 = vadd.f32 %v80, %v103
    %105 = vdwg.mxu0
    %v106 = vmax.f32 %v104, 0.0
    %107 = vst [vmem:[#allocation8] sm:$0xff] %v106
    %v108 = vld [vmem:[#allocation7] sm:$0xff]
    %v109 = vld [vmem:[#allocation7 + $0x8] sm:$0xff]
    %v110 = vld [vmem:[#allocation7 + $0x10] sm:$0xff]
    %v111 = vld [vmem:[#allocation7 + $0x18] sm:$0xff]
    %v112 = vld [vmem:[#allocation7 + $0x20] sm:$0xff]
    %v113 = vld [vmem:[#allocation7 + $0x28] sm:$0xff]
    %v114 = vld [vmem:[#allocation7 + $0x30] sm:$0xff]
    %v115 = vld [vmem:[#allocation7 + $0x38] sm:$0xff]
    %v116 = vld [vmem:[#allocation7 + $0x40] sm:$0xff]
    %v117 = vld [vmem:[#allocation7 + $0x48] sm:$0xff]
    %v118 = vld [vmem:[#allocation7 + $0x50] sm:$0xff]
    %v119 = vld [vmem:[#allocation7 + $0x58] sm:$0xff]
    %v120 = vld [vmem:[#allocation7 + $0x60] sm:$0xff]
    %v121 = vld [vmem:[#allocation7 + $0x68] sm:$0xff]
    %v122 = vld [vmem:[#allocation7 + $0x70] sm:$0xff]
    %v123 = vld [vmem:[#allocation7 + $0x78] sm:$0xff]
    %v124 = vld [vmem:[%s4] sm:$0x1]
    %v126 = vperm.slane %v124, 0
    %128 = vmatpush.msra.mxu0 %v123
    %129 = vmatpush.msra.mxu0 %v122
    %130 = vmatpush.msra.mxu0 %v121
    %131 = vmatpush.msra.mxu0 %v120
    %132 = vmatpush.msra.mxu0 %v119
    %133 = vmatpush.msra.mxu0 %v118
    %134 = vmatpush.msra.mxu0 %v117
    %135 = vmatpush.msra.mxu0 %v116
    %136 = vmatpush.msra.mxu0 %v115
    %137 = vmatpush.msra.mxu0 %v114
    %138 = vmatpush.msra.mxu0 %v113
    %139 = vmatpush.msra.mxu0 %v112
    %140 = vmatpush.msra.mxu0 %v111
    %141 = vmatpush.msra.mxu0 %v110
    %142 = vmatpush.msra.mxu0 %v109
    %143 = vmatpush.msra.mxu0 %v108
    %144 = vmatmul.f32.gmra.mxu0 %v106
    %v145 = vpop.f32.mrf.mxu0
    %v146 = vadd.f32 %v126, %v145
    %147 = vdwg.mxu0
    %v148 = vmul.f32 %v146, %v146
    %149 = vadd.xlane.f32.xlu0 %v148
    %v150 = vpop.xlane.xlu0 %149
    %v151 = vmax.f32 %v150, 1e-24
    %v152 = vrsqrt.pop %v151
    %v153 = vmul.f32 %v152, %v151
    %v154 = vmul.f32 %v153, %v152
    %v155 = vmul.f32 0.5, %v154
    %v156 = vsub.f32 1.5, %v155
    %v157 = vmul.f32 %v152, %v156
    %vm158 = vweird.f32 %v151
    %vm159 = vweird.f32 %v152
    %vm160 = vmor %vm158, %vm159
    %v161 = vsel %vm160, %v152, %v157
    %v162 = vmul.f32 %v146, %v161
    %163 = vst [vmem:[#allocation9] sm:$0xff] %v162
    // Predicated region
    $region34: #{tpu_custom_call.1} parent=1 // pred_check
      _
    $region35: #{tpu_custom_call.1} parent=1 // pred_check_branch
      %165 = sbr.rel (0) target = $region37
    $region36: #{tpu_custom_call.1} parent=1 // pred_region
      %167 = vsyncadd [#allocation4], 0
      %s169 = sshll.u32 [#allocation8], 4
      %s170 = int_to_ptr.vmem [resolvable:$true] %s169
      %s171 = sshll.u32 %s5, 4
      %s172 = int_to_ptr.hbm [resolvable:$true] %s171
      %174 = dma.vmem_to_hbm [thread:$0]  %s170, 128, %s172, [#allocation4]
    $region37: #{tpu_custom_call.1} parent=1 // pred_fallthru
      _
    // Predicated region
    $region38: #{tpu_custom_call.1} parent=1 // pred_check
      _
    $region39: #{tpu_custom_call.1} parent=1 // pred_check_branch
      %176 = sbr.rel (0) target = $region41
    $region40: #{tpu_custom_call.1} parent=1 // pred_region
      %178 = vsyncadd [#allocation10], 0
      %s180 = sshll.u32 [#allocation9], 4
      %s181 = int_to_ptr.vmem [resolvable:$true] %s180
      %s182 = sshll.u32 %s6, 4
      %s183 = int_to_ptr.hbm [resolvable:$true] %s182
      %185 = dma.vmem_to_hbm [thread:$0]  %s181, 128, %s183, [#allocation10]
    $region41: #{tpu_custom_call.1} parent=1 // pred_fallthru
      _
    // Predicated region
    $region42: #{tpu_custom_call.1} parent=1 // pred_check
      _
    $region43: #{tpu_custom_call.1} parent=1 // pred_check_branch
      %187 = sbr.rel (0) target = $region45
    $region44: #{tpu_custom_call.1} parent=1 // pred_region
      %189 = dma.done [#allocation4], 128
    $region45: #{tpu_custom_call.1} parent=1 // pred_fallthru
      _
    // Predicated region
    $region46: #{tpu_custom_call.1} parent=1 // pred_check
      _
    $region47: #{tpu_custom_call.1} parent=1 // pred_check_branch
      %191 = sbr.rel (0) target = $region49
    $region48: #{tpu_custom_call.1} parent=1 // pred_region
      %193 = dma.done [#allocation10], 128
    $region49: #{tpu_custom_call.1} parent=1 // pred_fallthru
      _
    %194 = vsyncpa [#allocation3], 1
    %195 = vsyncpa [#allocation6], 1
    %196 = vsyncpa [#allocation4], 1
    %197 = vsyncpa [#allocation10], 1

// kernel: tpu_custom_call.1
$region0: #{tpu_custom_call.1}
  #allocation0 [shape = 'u32[]', space=smem, size = 0x4, offset = 0x4, fixed_abs, tag = 'smem constant byte address 0x4 - core index']
  #allocation1 [shape = 'u32[72,128]{1,0:T(1,128)}', space=vmem, size = 0x9000, scoped, tag = 'internal scratch']
  %s0 = inlined_call_operand.hbm [shape: f32[8,64], index: 0, kind: input, shape index: {}]
  %s1 = inlined_call_operand.hbm [shape: f32[64,128], index: 1, kind: input, shape index: {}]
  %s2 = inlined_call_operand.vmem [shape: f32[1,128], index: 2, kind: input, shape index: {}]
  %s3 = inlined_call_operand.hbm [shape: f32[128,128], index: 3, kind: input, shape index: {}]
  %s4 = inlined_call_operand.vmem [shape: f32[1,128], index: 4, kind: input, shape index: {}]
  %s5 = inlined_call_operand.hbm [shape: f32[8,128], index: 5, kind: output, shape index: {0}]
  %s6 = inlined_call_operand.hbm [shape: f32[8,128], index: 6, kind: output, shape index: {1}]
  %7 = xla_tuple %s5, %s6
  %s8 = sld [smem:[#allocation0]]
  $region50: #{tpu_custom_call.1} parent=0
    _
  %s10 = ssub.s32 1, %s8
  %s11 = scalar_select 0, %s10, %s8
  $region1: #{tpu_custom_call.1} parent=0
    #allocation2 [shape = 'u8[4096]{0}', space=vmem, size = 0x1000, scoped, tag = 'input window, operand 0, single buffered']
    #allocation3 [shape = 's32[1]{0}', space=sflag, size = 0x4, scoped, tag = 'scoped memory for tpu_custom_call.1']
    #allocation4 [shape = 's32[1]{0}', space=sflag, size = 0x4, scoped, tag = 'scoped memory for tpu_custom_call.1']
    #allocation5 [shape = 'u8[32768]{0}', space=vmem, size = 0x8000, scoped, tag = 'input window, operand 1, single buffered']
    #allocation6 [shape = 's32[1]{0}', space=sflag, size = 0x4, scoped, tag = 'scoped memory for tpu_custom_call.1']
    #allocation7 [shape = 'u8[65536]{0}', space=vmem, size = 0x10000, scoped, tag = 'input window, operand 3, single buffered']
    #allocation8 [shape = 'u8[4096]{0}', space=vmem, size = 0x1000, scoped, tag = 'output window, operand 0, single buffered']
    #allocation9 [shape = 'u8[4096]{0}', space=vmem, size = 0x1000, scoped, tag = 'output window, operand 1, single buffered']
    #allocation10 [shape = 's32[1]{0}', space=sflag, size = 0x4, scoped, tag = 'scoped memory for tpu_custom_call.1']
    %12 = vsyncpa [#allocation3], 0
    %13 = vsyncpa [#allocation6], 0
    %14 = vsyncpa [#allocation4], 0
    %15 = vsyncpa [#allocation10], 0
    // Predicated region
    $region2: #{tpu_custom_call.1} parent=1 // pred_check
      _
    $region3: #{tpu_custom_call.1} parent=1 // pred_check_branch
      %17 = sbr.rel (0) target = $region5
    $region4: #{tpu_custom_call.1} parent=1 // pred_region
      %19 = vsyncadd [#allocation3], 0
      %s21 = sshll.u32 %s0, 4
      %s22 = int_to_ptr.hbm [resolvable:$true] %s21
      %s23 = sshll.u32 [#allocation2], 4
      %s24 = int_to_ptr.vmem [resolvable:$true] %s23
      %26 = dma.hbm_to_vmem [thread:$0]  %s22, 128, %s24, [#allocation3]
    $region5: #{tpu_custom_call.1} parent=1 // pred_fallthru
      _
    // Predicated region
    $region6: #{tpu_custom_call.1} parent=1 // pred_check
      _
    $region7: #{tpu_custom_call.1} parent=1 // pred_check_branch
      %28 = sbr.rel (0) target = $region9
    $region8: #{tpu_custom_call.1} parent=1 // pred_region
      %30 = vsyncadd [#allocation6], 0
      %s31 = sshll.u32 %s1, 4
      %s32 = int_to_ptr.hbm [resolvable:$true] %s31
      %s33 = sshll.u32 [#allocation5], 4
      %s34 = int_to_ptr.vmem [resolvable:$true] %s33
      %39 = dma.hbm_to_vmem [thread:$0]  %s32, 1024, %s34, [#allocation6], 128, 128, 8
    $region9: #{tpu_custom_call.1} parent=1 // pred_fallthru
      _
    // Predicated region
    $region10: #{tpu_custom_call.1} parent=1 // pred_check
      _
    $region11: #{tpu_custom_call.1} parent=1 // pred_check_branch
      %41 = sbr.rel (0) target = $region13
    $region12: #{tpu_custom_call.1} parent=1 // pred_region
      _
    $region13: #{tpu_custom_call.1} parent=1 // pred_fallthru
      _
    // Predicated region
    $region14: #{tpu_custom_call.1} parent=1 // pred_check
      _
    $region15: #{tpu_custom_call.1} parent=1 // pred_check_branch
      %43 = sbr.rel (0) target = $region17
    $region16: #{tpu_custom_call.1} parent=1 // pred_region
      %45 = vsyncadd [#allocation6], 0
      %s46 = sshll.u32 %s3, 4
      %s47 = int_to_ptr.hbm [resolvable:$true] %s46
      %s48 = sshll.u32 [#allocation7], 4
      %s49 = int_to_ptr.vmem [resolvable:$true] %s48
      %54 = dma.hbm_to_vmem [thread:$0]  %s47, 2048, %s49, [#allocation6], 128, 128, 8
    $region17: #{tpu_custom_call.1} parent=1 // pred_fallthru
      _
    // Predicated region
    $region18: #{tpu_custom_call.1} parent=1 // pred_check
      _
    $region19: #{tpu_custom_call.1} parent=1 // pred_check_branch
      %56 = sbr.rel (0) target = $region21
    $region20: #{tpu_custom_call.1} parent=1 // pred_region
      _
    $region21: #{tpu_custom_call.1} parent=1 // pred_fallthru
      _
    // Predicated region
    $region22: #{tpu_custom_call.1} parent=1 // pred_check
      _
    $region23: #{tpu_custom_call.1} parent=1 // pred_check_branch
      %58 = sbr.rel (0) target = $region25
    $region24: #{tpu_custom_call.1} parent=1 // pred_region
      %60 = dma.done [#allocation3], 128
    $region25: #{tpu_custom_call.1} parent=1 // pred_fallthru
      _
    // Predicated region
    $region26: #{tpu_custom_call.1} parent=1 // pred_check
      _
    $region27: #{tpu_custom_call.1} parent=1 // pred_check_branch
      %62 = sbr.rel (0) target = $region29
    $region28: #{tpu_custom_call.1} parent=1 // pred_region
      %64 = dma.done [#allocation6], 1024
    $region29: #{tpu_custom_call.1} parent=1 // pred_fallthru
      _
    // Predicated region
    $region30: #{tpu_custom_call.1} parent=1 // pred_check
      _
    $region31: #{tpu_custom_call.1} parent=1 // pred_check_branch
      %66 = sbr.rel (0) target = $region33
    $region32: #{tpu_custom_call.1} parent=1 // pred_region
      %68 = dma.done [#allocation6], 2048
    $region33: #{tpu_custom_call.1} parent=1 // pred_fallthru
      _
    %v69 = vld [vmem:[#allocation2] sm:$0xff]
    %v70 = vld [vmem:[#allocation5] sm:$0xff]
    %v71 = vld [vmem:[#allocation5 + $0x8] sm:$0xff]
    %v72 = vld [vmem:[#allocation5 + $0x10] sm:$0xff]
    %v73 = vld [vmem:[#allocation5 + $0x18] sm:$0xff]
    %v74 = vld [vmem:[#allocation5 + $0x20] sm:$0xff]
    %v75 = vld [vmem:[#allocation5 + $0x28] sm:$0xff]
    %v76 = vld [vmem:[#allocation5 + $0x30] sm:$0xff]
    %v77 = vld [vmem:[#allocation5 + $0x38] sm:$0xff]
    %v78 = vld [vmem:[%s2] sm:$0x1]
    %v80 = vperm.slane %v78, 0
    %vm82 = vcmask 523264
    %v84 = vsel %vm82, %v69, 0
    %86 = vmatpush.msra.mxu0 0.0
    %87 = vmatpush.msra.mxu0 0.0
    %88 = vmatpush.msra.mxu0 0.0
    %89 = vmatpush.msra.mxu0 0.0
    %90 = vmatpush.msra.mxu0 0.0
    %91 = vmatpush.msra.mxu0 0.0
    %92 = vmatpush.msra.mxu0 0.0
    %93 = vmatpush.msra.mxu0 0.0
    %94 = vmatpush.msra.mxu0 %v77
    %95 = vmatpush.msra.mxu0 %v76
    %96 = vmatpush.msra.mxu0 %v75
    %97 = vmatpush.msra.mxu0 %v74
    %98 = vmatpush.msra.mxu0 %v73
    %99 = vmatpush.msra.mxu0 %v72
    %100 = vmatpush.msra.mxu0 %v71
    %101 = vmatpush.msra.mxu0 %v70
    %102 = vmatmul.f32.gmra.mxu0 %v84
    %v103 = vpop.f32.mrf.mxu0
    %v104 = vadd.f32 %v80, %v103
    %105 = vdwg.mxu0
    %v106 = vmax.f32 %v104, 0.0
    %107 = vst [vmem:[#allocation8] sm:$0xff] %v106
    %v108 = vld [vmem:[#allocation7] sm:$0xff]
    %v109 = vld [vmem:[#allocation7 + $0x8] sm:$0xff]
    %v110 = vld [vmem:[#allocation7 + $0x10] sm:$0xff]
    %v111 = vld [vmem:[#allocation7 + $0x18] sm:$0xff]
    %v112 = vld [vmem:[#allocation7 + $0x20] sm:$0xff]
    %v113 = vld [vmem:[#allocation7 + $0x28] sm:$0xff]
    %v114 = vld [vmem:[#allocation7 + $0x30] sm:$0xff]
    %v115 = vld [vmem:[#allocation7 + $0x38] sm:$0xff]
    %v116 = vld [vmem:[#allocation7 + $0x40] sm:$0xff]
    %v117 = vld [vmem:[#allocation7 + $0x48] sm:$0xff]
    %v118 = vld [vmem:[#allocation7 + $0x50] sm:$0xff]
    %v119 = vld [vmem:[#allocation7 + $0x58] sm:$0xff]
    %v120 = vld [vmem:[#allocation7 + $0x60] sm:$0xff]
    %v121 = vld [vmem:[#allocation7 + $0x68] sm:$0xff]
    %v122 = vld [vmem:[#allocation7 + $0x70] sm:$0xff]
    %v123 = vld [vmem:[#allocation7 + $0x78] sm:$0xff]
    %v124 = vld [vmem:[%s4] sm:$0x1]
    %v126 = vperm.slane %v124, 0
    %128 = vmatpush.msra.mxu0 %v123
    %129 = vmatpush.msra.mxu0 %v122
    %130 = vmatpush.msra.mxu0 %v121
    %131 = vmatpush.msra.mxu0 %v120
    %132 = vmatpush.msra.mxu0 %v119
    %133 = vmatpush.msra.mxu0 %v118
    %134 = vmatpush.msra.mxu0 %v117
    %135 = vmatpush.msra.mxu0 %v116
    %136 = vmatpush.msra.mxu0 %v115
    %137 = vmatpush.msra.mxu0 %v114
    %138 = vmatpush.msra.mxu0 %v113
    %139 = vmatpush.msra.mxu0 %v112
    %140 = vmatpush.msra.mxu0 %v111
    %141 = vmatpush.msra.mxu0 %v110
    %142 = vmatpush.msra.mxu0 %v109
    %143 = vmatpush.msra.mxu0 %v108
    %144 = vmatmul.f32.gmra.mxu0 %v106
    %v145 = vpop.f32.mrf.mxu0
    %v146 = vadd.f32 %v126, %v145
    %147 = vdwg.mxu0
    %v148 = vmul.f32 %v146, %v146
    %149 = vadd.xlane.f32.xlu0 %v148
    %v150 = vpop.xlane.xlu0 %149
    %v151 = vmax.f32 %v150, 1e-24
    %v152 = vrsqrt.pop %v151
    %v153 = vmul.f32 %v152, %v151
    %v154 = vmul.f32 %v153, %v152
    %v155 = vmul.f32 0.5, %v154
    %v156 = vsub.f32 1.5, %v155
    %v157 = vmul.f32 %v152, %v156
    %vm158 = vweird.f32 %v151
    %vm159 = vweird.f32 %v152
    %vm160 = vmor %vm158, %vm159
    %v161 = vsel %vm160, %v152, %v157
    %v162 = vmul.f32 %v146, %v161
    %163 = vst [vmem:[#allocation9] sm:$0xff] %v162
    // Predicated region
    $region34: #{tpu_custom_call.1} parent=1 // pred_check
      _
    $region35: #{tpu_custom_call.1} parent=1 // pred_check_branch
      %165 = sbr.rel (0) target = $region37
    $region36: #{tpu_custom_call.1} parent=1 // pred_region
      %167 = vsyncadd [#allocation4], 0
      %s169 = sshll.u32 [#allocation8], 4
      %s170 = int_to_ptr.vmem [resolvable:$true] %s169
      %s171 = sshll.u32 %s5, 4
      %s172 = int_to_ptr.hbm [resolvable:$true] %s171
      %174 = dma.vmem_to_hbm [thread:$0]  %s170, 128, %s172, [#allocation4]
    $region37: #{tpu_custom_call.1} parent=1 // pred_fallthru
      _
    // Predicated region
    $region38: #{tpu_custom_call.1} parent=1 // pred_check
      _
    $region39: #{tpu_custom_call.1} parent=1 // pred_check_branch
      %176 = sbr.rel (0) target = $region41
    $region40: #{tpu_custom_call.1} parent=1 // pred_region
      %178 = vsyncadd [#allocation10], 0
      %s180 = sshll.u32 [#allocation9], 4
      %s181 = int_to_ptr.vmem [resolvable:$true] %s180
      %s182 = sshll.u32 %s6, 4
      %s183 = int_to_ptr.hbm [resolvable:$true] %s182
      %185 = dma.vmem_to_hbm [thread:$0]  %s181, 128, %s183, [#allocation10]
    $region41: #{tpu_custom_call.1} parent=1 // pred_fallthru
      _
    // Predicated region
    $region42: #{tpu_custom_call.1} parent=1 // pred_check
      _
    $region43: #{tpu_custom_call.1} parent=1 // pred_check_branch
      %187 = sbr.rel (0) target = $region45
    $region44: #{tpu_custom_call.1} parent=1 // pred_region
      %189 = dma.done [#allocation4], 128
    $region45: #{tpu_custom_call.1} parent=1 // pred_fallthru
      _
    // Predicated region
    $region46: #{tpu_custom_call.1} parent=1 // pred_check
      _
    $region47: #{tpu_custom_call.1} parent=1 // pred_check_branch
      %191 = sbr.rel (0) target = $region49
    $region48: #{tpu_custom_call.1} parent=1 // pred_region
      %193 = dma.done [#allocation10], 128
    $region49: #{tpu_custom_call.1} parent=1 // pred_fallthru
      _
    %194 = vsyncpa [#allocation3], 1
    %195 = vsyncpa [#allocation6], 1
    %196 = vsyncpa [#allocation4], 1
    %197 = vsyncpa [#allocation10], 1

</llo_original>
